<compile_context>
chip_gen: v5e
topology: v5e:2x2
jax: 0.10.0
libtpu: 0.0.40
codegen_flags: <defaults>
</compile_context>

<pallas_src>
import math
import functools

import jax
import jax.numpy as jnp
from jax.experimental import pallas as pl
from jax.experimental.pallas import tpu as pltpu

LANE = 128
SUBLANE = 8


def _l1_mu_kernel(pred_ref, label_ref, partial_ref, *, mu, rows, block_rows,
                  need_mask):
    """Per-block partial sum of |log1p(mu*pred) - log1p(mu*label)|.

    pred_ref / label_ref : (block_rows, 128) input tiles (last one may be
                           a partial boundary block).
    partial_ref          : (8, 128) f32 lane-dense partial sum for this block.
    The 1/log(1+mu) scale and the division by N are applied in the wrapper.
    """
    p = pred_ref[...].astype(jnp.float32)
    l = label_ref[...].astype(jnp.float32)
    mu_f = jnp.float32(mu)
    diff = jnp.abs(jnp.log1p(mu_f * p) - jnp.log1p(mu_f * l))

    if need_mask:
        # Ragged boundary block: zero rows past the true row count so the
        # unspecified out-of-bounds data does not pollute the sum.
        i = pl.program_id(0)
        row_idx = jax.lax.broadcasted_iota(jnp.int32, diff.shape, 0) + i * block_rows
        diff = jnp.where(row_idx < rows, diff, jnp.float32(0.0))

    # Sublane-group reduction: (block_rows,128) -> (block_rows//8, 8, 128)
    # -> sum over the leading axis -> (8,128).  Pure VPU vreg adds; the single
    # expensive cross-lane reduce is done once, outside the kernel.
    partial_ref[...] = jnp.sum(
        diff.reshape(block_rows // SUBLANE, SUBLANE, LANE), axis=0
    )


def l1_mu_loss(pred, label, mu=5000, block_rows=2048):
    assert pred.shape == label.shape
    n_elems = pred.size
    inv_log_denom = 1.0 / math.log(1.0 + mu)

    # Row-major flatten only (free layout reinterpretation); no astype / pad
    # of the full array in the wrapper.
    flat_p = pred.reshape(-1)
    flat_l = label.reshape(-1)

    n_main = (n_elems // LANE) * LANE       # lane-aligned prefix handled by kernel
    rows = n_main // LANE

    main_sum = jnp.float32(0.0)
    if rows >= SUBLANE:
        br = min(block_rows, rows)
        br = max(SUBLANE, (br // SUBLANE) * SUBLANE)   # multiple of 8 sublanes
        grid = pl.cdiv(rows, br)
        need_mask = (rows % br) != 0

        p2d = flat_p[:n_main].reshape(rows, LANE)
        l2d = flat_l[:n_main].reshape(rows, LANE)

        partials = pl.pallas_call(
            functools.partial(_l1_mu_kernel, mu=mu, rows=rows, block_rows=br,
                              need_mask=need_mask),
            out_shape=jax.ShapeDtypeStruct((grid * SUBLANE, LANE), jnp.float32),
            grid_spec=pltpu.PrefetchScalarGridSpec(
                num_scalar_prefetch=0,
                grid=(grid,),
                in_specs=[
                    pl.BlockSpec((br, LANE), lambda i: (i, 0)),
                    pl.BlockSpec((br, LANE), lambda i: (i, 0)),
                ],
                # Lane-dense per-block partials: no serial accumulator, so the
                # grid axis can be sharded across TensorCores (v7x megacore).
                out_specs=pl.BlockSpec((SUBLANE, LANE), lambda i: (i, 0)),
            ),
            compiler_params=pltpu.CompilerParams(
                dimension_semantics=("parallel",),
                # 2 inputs x 2 pipeline buffers x (2048,128) f32 ~= 4 MiB plus
                # elementwise temporaries; 32 MiB is safe on v5e/v6e/v7x.
                vmem_limit_bytes=32 * 1024 * 1024,
            ),
        )(p2d, l2d)
        main_sum = jnp.sum(partials)
    else:
        # Too small for a lane-dense tile; handle everything in the tail path.
        n_main = 0

    total = main_sum
    if n_main < n_elems:
        # Sub-128-element ragged tail: tiny, do it in plain jnp.
        tp = flat_p[n_main:].astype(jnp.float32)
        tl = flat_l[n_main:].astype(jnp.float32)
        total = total + jnp.sum(jnp.abs(jnp.log1p(mu * tp) - jnp.log1p(mu * tl)))

    return total * jnp.float32(inv_log_denom) / jnp.float32(n_elems)


def _reference(pred, label, mu=5000):
    c = lambda x: jnp.log1p(mu * x.astype(jnp.float32)) / math.log(1.0 + mu)
    return jnp.mean(jnp.abs(c(pred) - c(label)))


if __name__ == "__main__":
    key = jax.random.PRNGKey(0)
    k1, k2 = jax.random.split(key)
    shape = (2, 4, 16, 16)  # NCHW
    # HDR-style non-negative inputs (log1p(mu*x) requires x > -1/mu)
    pred = jax.random.uniform(k1, shape, dtype=jnp.float32, minval=0.0, maxval=2.0)
    label = jax.random.uniform(k2, shape, dtype=jnp.float32, minval=0.0, maxval=2.0)

    out = l1_mu_loss(pred, label, mu=5000)
    out = jax.block_until_ready(out)

    ref = _reference(pred, label, mu=5000)
    assert jnp.allclose(out, ref, rtol=1e-5, atol=1e-6), (out, ref)
    print("KERNEL_OK")
</pallas_src>

<mosaic_0001>
module attributes {stable_mosaic.version = 11 : i64} {
  func.func @_l1_mu_kernel(%arg0: i32, %arg1: memref<16x128xf32, #tpu.memory_space<vmem>>, %arg2: memref<16x128xf32, #tpu.memory_space<vmem>>, %arg3: memref<8x128xf32, #tpu.memory_space<vmem>>) attributes {dimension_semantics = [#tpu.dimension_semantics<parallel>], iteration_bounds = array<i64: 1>, scalar_prefetch = 0 : i64, scratch_operands = 0 : i64, tpu.core_type = #tpu.core_type<tc>, window_params = [{transform_indices = @transform_0, window_bounds = array<i64: 16, 128>}, {transform_indices = @transform_1, window_bounds = array<i64: 16, 128>}, {transform_indices = @transform_2, window_bounds = array<i64: 8, 128>}]} {
    %c0 = arith.constant 0 : index
    %c0_0 = arith.constant 0 : index
    %0 = vector.load %arg1[%c0, %c0_0] : memref<16x128xf32, #tpu.memory_space<vmem>>, vector<16x128xf32>
    %c0_1 = arith.constant 0 : index
    %c0_2 = arith.constant 0 : index
    %1 = vector.load %arg2[%c0_1, %c0_2] : memref<16x128xf32, #tpu.memory_space<vmem>>, vector<16x128xf32>
    %cst = arith.constant 5.000000e+03 : f32
    %2 = vector.broadcast %cst : f32 to vector<16x128xf32>
    %3 = arith.mulf %2, %0 : vector<16x128xf32>
    %4 = math.log1p %3 : vector<16x128xf32>
    %cst_3 = arith.constant 5.000000e+03 : f32
    %5 = vector.broadcast %cst_3 : f32 to vector<16x128xf32>
    %6 = arith.mulf %5, %1 : vector<16x128xf32>
    %7 = math.log1p %6 : vector<16x128xf32>
    %8 = arith.subf %4, %7 : vector<16x128xf32>
    %9 = math.absf %8 : vector<16x128xf32>
    %10 = vector.shape_cast %9 : vector<16x128xf32> to vector<2x8x128xf32>
    %cst_4 = arith.constant dense<0.000000e+00> : vector<8x128xf32>
    %11 = vector.multi_reduction <add>, %10, %cst_4 [0] : vector<2x8x128xf32> to vector<8x128xf32>
    %c0_5 = arith.constant 0 : index
    %c0_6 = arith.constant 0 : index
    %12 = vector.load %arg3[%c0_5, %c0_6] : memref<8x128xf32, #tpu.memory_space<vmem>>, vector<8x128xf32>
    tpu.vector_store %arg3[%c0_5, %c0_6], %11 {strides = array<i32>} : memref<8x128xf32, #tpu.memory_space<vmem>>, vector<8x128xf32>,
    return
  }
  func.func @transform_0(%arg0: i32) -> (i32, i32) {
    %c0_i32 = arith.constant 0 : i32
    %c0_i32_0 = arith.constant 0 : i32
    return %arg0, %c0_i32 : i32, i32
  }
  func.func @transform_1(%arg0: i32) -> (i32, i32) {
    %c0_i32 = arith.constant 0 : i32
    %c0_i32_0 = arith.constant 0 : i32
    return %arg0, %c0_i32 : i32, i32
  }
  func.func @transform_2(%arg0: i32) -> (i32, i32) {
    %c0_i32 = arith.constant 0 : i32
    %c0_i32_0 = arith.constant 0 : i32
    return %arg0, %c0_i32 : i32, i32
  }
}

</mosaic_0001>

<llo_original>
// kernel: tpu_custom_call.1
$region0: #{tpu_custom_call.1}
  #allocation0 [shape = 'u32[]', space=smem, size = 0x4, offset = 0x4, fixed_abs, tag = 'smem constant byte address 0x4 - core index']
  #allocation1 [shape = 'u32[72,128]{1,0:T(1,128)}', space=vmem, size = 0x9000, scoped, tag = 'internal scratch']
  %s0 = inlined_call_operand.hbm [shape: f32[16,128], index: 0, kind: input, shape index: {}]
  %s1 = inlined_call_operand.hbm [shape: f32[16,128], index: 1, kind: input, shape index: {}]
  %s2 = inlined_call_operand.hbm [shape: f32[8,128], index: 2, kind: output, shape index: {}]
  %s3 = sld [smem:[#allocation0]]
  $region26: #{tpu_custom_call.1} parent=0
    _
  %s5 = ssub.s32 1, %s3
  %s6 = scalar_select 0, %s5, %s3
  $region1: #{tpu_custom_call.1} parent=0
    #allocation2 [shape = 'u8[8192]{0}', space=vmem, size = 0x2000, scoped, tag = 'input window, operand 0, single buffered']
    #allocation3 [shape = 's32[1]{0}', space=sflag, size = 0x4, scoped, tag = 'scoped memory for tpu_custom_call.1']
    #allocation4 [shape = 's32[1]{0}', space=sflag, size = 0x4, scoped, tag = 'scoped memory for tpu_custom_call.1']
    #allocation5 [shape = 'u8[8192]{0}', space=vmem, size = 0x2000, scoped, tag = 'input window, operand 1, single buffered']
    #allocation6 [shape = 's32[1]{0}', space=sflag, size = 0x4, scoped, tag = 'scoped memory for tpu_custom_call.1']
    #allocation7 [shape = 'u8[4096]{0}', space=vmem, size = 0x1000, scoped, tag = 'output window, operand 0, single buffered']
    %7 = vsyncpa [#allocation3], 0
    %8 = vsyncpa [#allocation6], 0
    %9 = vsyncpa [#allocation4], 0
    // Predicated region
    $region2: #{tpu_custom_call.1} parent=1 // pred_check
      _
    $region3: #{tpu_custom_call.1} parent=1 // pred_check_branch
      %11 = sbr.rel (0) target = $region5
    $region4: #{tpu_custom_call.1} parent=1 // pred_region
      %13 = vsyncadd [#allocation3], 0
      %s14 = sshll.u32 %s0, 4
      %s15 = int_to_ptr.hbm [resolvable:$true] %s14
      %s16 = sshll.u32 [#allocation2], 4
      %s17 = int_to_ptr.vmem [resolvable:$true] %s16
      %22 = dma.hbm_to_vmem [thread:$0]  %s15, 256, %s17, [#allocation3], 128, 128, 8
    $region5: #{tpu_custom_call.1} parent=1 // pred_fallthru
      _
    // Predicated region
    $region6: #{tpu_custom_call.1} parent=1 // pred_check
      _
    $region7: #{tpu_custom_call.1} parent=1 // pred_check_branch
      %24 = sbr.rel (0) target = $region9
    $region8: #{tpu_custom_call.1} parent=1 // pred_region
      %26 = vsyncadd [#allocation6], 0
      %s27 = sshll.u32 %s1, 4
      %s28 = int_to_ptr.hbm [resolvable:$true] %s27
      %s29 = sshll.u32 [#allocation5], 4
      %s30 = int_to_ptr.vmem [resolvable:$true] %s29
      %35 = dma.hbm_to_vmem [thread:$0]  %s28, 256, %s30, [#allocation6], 128, 128, 8
    $region9: #{tpu_custom_call.1} parent=1 // pred_fallthru
      _
    // Predicated region
    $region10: #{tpu_custom_call.1} parent=1 // pred_check
      _
    $region11: #{tpu_custom_call.1} parent=1 // pred_check_branch
      %37 = sbr.rel (0) target = $region13
    $region12: #{tpu_custom_call.1} parent=1 // pred_region
      %39 = dma.done [#allocation3], 256
    $region13: #{tpu_custom_call.1} parent=1 // pred_fallthru
      _
    // Predicated region
    $region14: #{tpu_custom_call.1} parent=1 // pred_check
      _
    $region15: #{tpu_custom_call.1} parent=1 // pred_check_branch
      %41 = sbr.rel (0) target = $region17
    $region16: #{tpu_custom_call.1} parent=1 // pred_region
      %43 = dma.done [#allocation6], 256
    $region17: #{tpu_custom_call.1} parent=1 // pred_fallthru
      _
    %v44 = vld [vmem:[#allocation2] sm:$0xff]
    %v45 = vld [vmem:[#allocation2 + $0x8] sm:$0xff]
    %v46 = vld [vmem:[#allocation5] sm:$0xff]
    %v47 = vld [vmem:[#allocation5 + $0x8] sm:$0xff]
    %v48 = vmul.f32 %v44, 5000.0
    %v49 = vmul.f32 %v45, 5000.0
    %v50 = vadd.f32 %v48, 1.0
    %v51 = vlog2.pop %v50
    %v52 = vmul.f32 %v51, 0.6931472
    %v53 = vmul.f32 -0.5, %v48
    %v54 = vadd.f32 %v53, 1.0
    %v55 = vmul.f32 %v54, %v48
    %v56 = vand.u32 2147483647, %v48
    %vm57 = vcmp.lt.f32.partialorder %v56, 0.0004427343
    %v58 = vsel %vm57, %v55, %v52
    %v59 = vadd.f32 %v49, 1.0
    %v60 = vlog2.pop %v59
    %v61 = vmul.f32 %v60, 0.6931472
    %v62 = vmul.f32 -0.5, %v49
    %v63 = vadd.f32 %v62, 1.0
    %v64 = vmul.f32 %v63, %v49
    %v65 = vand.u32 2147483647, %v49
    %vm66 = vcmp.lt.f32.partialorder %v65, 0.0004427343
    %v67 = vsel %vm66, %v64, %v61
    %v68 = vmul.f32 %v46, 5000.0
    %v69 = vmul.f32 %v47, 5000.0
    %v70 = vadd.f32 %v68, 1.0
    %v71 = vlog2.pop %v70
    %v72 = vmul.f32 %v71, 0.6931472
    %v73 = vmul.f32 -0.5, %v68
    %v74 = vadd.f32 %v73, 1.0
    %v75 = vmul.f32 %v74, %v68
    %v76 = vand.u32 2147483647, %v68
    %vm77 = vcmp.lt.f32.partialorder %v76, 0.0004427343
    %v78 = vsel %vm77, %v75, %v72
    %v79 = vadd.f32 %v69, 1.0
    %v80 = vlog2.pop %v79
    %v81 = vmul.f32 %v80, 0.6931472
    %v82 = vmul.f32 -0.5, %v69
    %v83 = vadd.f32 %v82, 1.0
    %v84 = vmul.f32 %v83, %v69
    %v85 = vand.u32 2147483647, %v69
    %vm86 = vcmp.lt.f32.partialorder %v85, 0.0004427343
    %v87 = vsel %vm86, %v84, %v81
    %v88 = vsub.f32 %v58, %v78
    %v89 = vsub.f32 %v67, %v87
    %v90 = vand.u32 2147483647, %v88
    %v91 = vand.u32 2147483647, %v89
    %v92 = vadd.f32 %v90, %v91
    %93 = vst [vmem:[#allocation7] sm:$0xff] %v92
    // Predicated region
    $region18: #{tpu_custom_call.1} parent=1 // pred_check
      _
    $region19: #{tpu_custom_call.1} parent=1 // pred_check_branch
      %95 = sbr.rel (0) target = $region21
    $region20: #{tpu_custom_call.1} parent=1 // pred_region
      %97 = vsyncadd [#allocation4], 0
      %s99 = sshll.u32 [#allocation7], 4
      %s100 = int_to_ptr.vmem [resolvable:$true] %s99
      %s101 = sshll.u32 %s2, 4
      %s102 = int_to_ptr.hbm [resolvable:$true] %s101
      %104 = dma.vmem_to_hbm [thread:$0]  %s100, 128, %s102, [#allocation4]
    $region21: #{tpu_custom_call.1} parent=1 // pred_fallthru
      _
    // Predicated region
    $region22: #{tpu_custom_call.1} parent=1 // pred_check
      _
    $region23: #{tpu_custom_call.1} parent=1 // pred_check_branch
      %106 = sbr.rel (0) target = $region25
    $region24: #{tpu_custom_call.1} parent=1 // pred_region
      %108 = dma.done [#allocation4], 128
    $region25: #{tpu_custom_call.1} parent=1 // pred_fallthru
      _
    %109 = vsyncpa [#allocation3], 1
    %110 = vsyncpa [#allocation6], 1
    %111 = vsyncpa [#allocation4], 1

</llo_original>
